<compile_context>
chip_gen: v7x
topology: tpu7x:2x2x1
jax: 0.10.0
libtpu: 0.0.40
codegen_flags: <defaults>
</compile_context>

<pallas_src>
import functools

import jax
import jax.numpy as jnp
import numpy as np
from jax.experimental import pallas as pl
from jax.experimental.pallas import tpu as pltpu


# ---------------------------------------------------------------------------
# Pallas kernel: transposed conv (phase decomposition) + BN statistics
# ---------------------------------------------------------------------------
def _conv_stats_kernel(xa_ref, xn_ref, w_ref, y_ref, s_ref, q_ref):
    # xa_ref : (1, TH, W+1, Cin) bf16   input rows of this tile (1 zero col)
    # xn_ref : (1, 1,  W+1, Cin) bf16   row just below the tile (zeros at edge)
    # w_ref  : (4*Cin, 4*Cout)   bf16   phase-packed transposed-conv weights
    # y_ref  : (1, TH, W, 4*Cout) bf16  conv output, 4 phases packed on lanes
    # s_ref  : (1, 1, 1, 4*Cout) f32    per-(batch, split, phase*chan) sum
    # q_ref  : (1, 1, 1, 4*Cout) f32    per-(batch, split, phase*chan) sum sq
    _, TH, Wp, Cin = xa_ref.shape
    W = Wp - 1
    C4 = w_ref.shape[1]

    xa = xa_ref[0]                                    # (TH, W+1, Cin)
    # Shifted-row view built in-kernel from the tile + the 1-row halo slab.
    if TH > 1:
        xb = jnp.concatenate([xa[1:], xn_ref[0]], axis=0)   # (TH, W+1, Cin)
    else:
        xb = xn_ref[0]

    # im2col over the 4 shifted views; lane index = view * Cin + ci.
    #   v0 = x[r, c]  v1 = x[r, c+1]  v2 = x[r+1, c]  v3 = x[r+1, c+1]
    xcol = jnp.concatenate(
        [xa[:, :W, :], xa[:, 1:, :], xb[:, :W, :], xb[:, 1:, :]],
        axis=-1).reshape(TH * W, 4 * Cin)

    # Single MXU matmul: all taps folded into the contraction dimension,
    # bf16 operands, f32 accumulation.  (No conv bias: cancelled by BN.)
    y = jnp.dot(xcol, w_ref[...], preferred_element_type=jnp.float32)

    # bf16 writeback of the phase-packed conv output.
    y_ref[...] = y.reshape(1, TH, W, C4).astype(y_ref.dtype)

    # Fused single-pass BatchNorm statistics (f32 accumulators, resident
    # across the innermost row-tile axis; initialized on its first step).
    @pl.when(pl.program_id(2) == 0)
    def _():
        s_ref[...] = jnp.zeros_like(s_ref)
        q_ref[...] = jnp.zeros_like(q_ref)

    s_ref[...] += jnp.sum(y, axis=0).reshape(1, 1, 1, C4)
    q_ref[...] += jnp.sum(y * y, axis=0).reshape(1, 1, 1, C4)


# ---------------------------------------------------------------------------
# Generation-aware planning helpers (plain Python, run outside the jit)
# ---------------------------------------------------------------------------
def _vmem_plan():
    """Return (row_tile_budget_bytes, vmem_limit_bytes) for this TPU."""
    cap = None
    try:
        cap = int(pltpu.get_tpu_info().vmem_capacity_bytes)
    except Exception:
        cap = None
    if cap is None:
        try:
            kind = jax.devices()[0].device_kind.lower()
        except Exception:
            kind = ""
        cap = (128 << 20) if ("v5" in kind or "v6" in kind) else (64 << 20)
    if cap >= (96 << 20):            # v5e / v6e: 128 MiB physical VMEM
        return 14 << 20, 64 << 20
    return 10 << 20, 40 << 20        # v7x (64 MiB per TensorCore) / unknown


def _pick_row_tile(H, W, Cin, Cout, budget_bytes):
    """Largest row tile (divisor of H) whose per-step working set fits budget."""
    c4 = 4 * Cout

    def rup(a, m):
        return -(-a // m) * m

    lanes = lambda c: max(rup(c, 128), 128)   # VMEM lane padding of minor dim
    subl = lambda r: rup(r, 8)                # sublane padding

    per_row = (
        2 * subl(W + 1) * lanes(Cin) * 2      # xa tile, double buffered, bf16
        + subl(W) * lanes(4 * Cin) * 2        # im2col slab, bf16
        + subl(W) * lanes(c4) * 4             # f32 matmul result
        + 2 * subl(W) * lanes(c4) * 2)        # conv-out tile, double buf, bf16
    fixed = (2 * subl(4 * Cin) * lanes(c4) * 2      # weights, double buffered
             + 4 * subl(W + 1) * lanes(Cin) * 2)    # next-row slabs / misc

    th = max(int((budget_bytes - fixed) // max(per_row, 1)), 1)
    th = min(th, H)
    while H % th:
        th -= 1
    return th


# ---------------------------------------------------------------------------
# Jitted implementation
# ---------------------------------------------------------------------------
@functools.partial(
    jax.jit,
    static_argnames=("eps", "activation", "leakage", "row_tile", "hsplit",
                     "vmem_limit"))
def _upsampler_impl(x_nchw, w, b, gamma, beta, *, eps, activation, leakage,
                    row_tile, hsplit, vmem_limit):
    del b  # exactly cancelled by training-mode BatchNorm mean subtraction

    N, Cin, H, W = x_nchw.shape
    Cout = w.shape[1]
    C4 = 4 * Cout
    OH, OW = 2 * H, 2 * W

    TH = row_tile
    nb = H // TH                 # row tiles per image
    hs = hsplit                  # parallel row halves
    tps = nb // hs               # row tiles per half (reduction axis)
    grid = (N, hs, tps)

    # ---- layout glue (XLA, cheap): NCHW -> NHWC bf16 + one zero column ----
    x_nhwc = jnp.transpose(x_nchw, (0, 2, 3, 1)).astype(jnp.bfloat16)
    xa = jnp.pad(x_nhwc, ((0, 0), (0, 0), (0, 1), (0, 0)))     # (N, H, W+1, Cin)

    # Tiny per-tile "next row" halo slab: row (hb+1)*TH, zeros for the last
    # tile (replaces the full duplicated row-shifted input copy).
    if nb > 1:
        nxt = jnp.concatenate(
            [xa[:, TH::TH, :, :],
             jnp.zeros((N, 1, W + 1, Cin), xa.dtype)], axis=1)  # (N, nb, W+1, Cin)
    else:
        nxt = jnp.zeros((N, 1, W + 1, Cin), xa.dtype)

    # ---- phase-packed weight matrix (4*Cin, 4*Cout) -------------------------
    # views : v0=x[r,c]  v1=x[r,c+1]  v2=x[r+1,c]  v3=x[r+1,c+1]
    # phases: p = 2*dh + dw  -> output pixel (2r+dh, 2c+dw)
    wb = jnp.zeros((4, Cin, 4, Cout), jnp.float32)
    wb = wb.at[0, :, 0].set(w[:, :, 1, 1])   # (even, even)
    wb = wb.at[0, :, 1].set(w[:, :, 1, 2])   # (even, odd)
    wb = wb.at[1, :, 1].set(w[:, :, 1, 0])
    wb = wb.at[0, :, 2].set(w[:, :, 2, 1])   # (odd, even)
    wb = wb.at[2, :, 2].set(w[:, :, 0, 1])
    wb = wb.at[0, :, 3].set(w[:, :, 2, 2])   # (odd, odd)
    wb = wb.at[1, :, 3].set(w[:, :, 2, 0])
    wb = wb.at[2, :, 3].set(w[:, :, 0, 2])
    wb = wb.at[3, :, 3].set(w[:, :, 0, 0])
    wbig = wb.reshape(4 * Cin, C4).astype(jnp.bfloat16)

    row_idx = lambda n, s, t: (n, s * tps + t, 0, 0)
    stat_idx = lambda n, s, t: (n, s, 0, 0)

    # ---- single Pallas pass: conv + BN statistics ----------------------------
    conv_packed, psum, psq = pl.pallas_call(
        _conv_stats_kernel,
        grid_spec=pltpu.PrefetchScalarGridSpec(
            num_scalar_prefetch=0,
            grid=grid,
            in_specs=[
                pl.BlockSpec((1, TH, W + 1, Cin), row_idx),
                pl.BlockSpec((1, 1, W + 1, Cin), row_idx),
                pl.BlockSpec((4 * Cin, C4), lambda n, s, t: (0, 0)),
            ],
            out_specs=[
                pl.BlockSpec((1, TH, W, C4), row_idx),
                pl.BlockSpec((1, 1, 1, C4), stat_idx),
                pl.BlockSpec((1, 1, 1, C4), stat_idx),
            ],
        ),
        out_shape=[
            jax.ShapeDtypeStruct((N, H, W, C4), jnp.bfloat16),
            jax.ShapeDtypeStruct((N, hs, 1, C4), jnp.float32),
            jax.ShapeDtypeStruct((N, hs, 1, C4), jnp.float32),
        ],
        compiler_params=pltpu.CompilerParams(
            dimension_semantics=("parallel", "parallel", "arbitrary"),
            vmem_limit_bytes=vmem_limit),
    )(xa, nxt, wbig)

    # ---- finish BN statistics (tiny, XLA) -------------------------------------
    cnt = jnp.float32(N * OH * OW)
    ssum = psum.reshape(-1, 4, Cout).sum(axis=(0, 1))
    ssq = psq.reshape(-1, 4, Cout).sum(axis=(0, 1))
    mean = ssum / cnt
    # Biased batch variance (training-mode BN).  E[x^2]-E[x]^2 in f32 is
    # acceptable here (conv outputs near zero-mean); clamp guards cancellation.
    var = jnp.maximum(ssq / cnt - mean * mean, 0.0)
    inv = jax.lax.rsqrt(var + jnp.float32(eps))
    scale_c = gamma.astype(jnp.float32) * inv
    shift_c = beta.astype(jnp.float32) - mean * scale_c

    # ---- BN affine + activation + depth-to-space + NHWC->NCHW ----------------
    # Pure XLA: the elementwise work fuses into the single transpose, so the
    # big tensor is read once (bf16) and written once (f32 NCHW output).
    z = conv_packed.astype(jnp.float32).reshape(N, H, W, 2, 2, Cout)
    z = z * scale_c + shift_c
    if activation == "relu":
        z = jnp.maximum(z, 0.0)
    elif activation == "leaky_relu":
        z = jnp.where(z > 0, z, jnp.float32(leakage) * z)
    # 'none' -> identity
    out = jnp.transpose(z, (0, 5, 1, 3, 2, 4))       # (n, co, r, dh, c, dw)
    return out.reshape(N, Cout, OH, OW)


# ---------------------------------------------------------------------------
# Public wrapper: generation-aware tile planning, then jitted impl
# ---------------------------------------------------------------------------
def upsampler_block(x_nchw, w, b, gamma, beta, *, eps=1e-3, activation="relu",
                    leakage=0.2, row_tile=None):
    """ERFNet UpsamplerBlock forward (training-mode BatchNorm).

    x_nchw : (N, Cin, H, W) f32
    w      : (Cin, Cout, 3, 3) PyTorch ConvTranspose2d weight layout
    b      : (Cout,) conv bias -- dropped: exactly cancelled by training-mode
             BatchNorm mean subtraction.  Do NOT reuse this kernel for
             eval-mode (running-stats) BN without reinstating the bias.
    """
    N, Cin, H, W = x_nchw.shape
    Cout = w.shape[1]

    budget, vmem_limit = _vmem_plan()
    if row_tile is None:
        row_tile = _pick_row_tile(H, W, Cin, Cout, budget)
        # If the whole image fits in one tile, split rows in two so v7x's two
        # TensorCores both get work even at batch 1 (free on v5e/v6e).
        if row_tile == H and H > 1 and H % 2 == 0:
            row_tile = H // 2
    row_tile = int(row_tile)
    assert H % row_tile == 0, (H, row_tile)
    nb = H // row_tile
    hsplit = 2 if (nb >= 2 and nb % 2 == 0) else 1

    return _upsampler_impl(x_nchw, w, b, gamma, beta,
                           eps=float(eps), activation=str(activation),
                           leakage=float(leakage), row_tile=row_tile,
                           hsplit=int(hsplit), vmem_limit=int(vmem_limit))


# ---------------------------------------------------------------------------
# Pure-JAX reference (ConvTranspose2d via lhs-dilated conv) for checking.
# Conv operands are cast to bf16 (f32 accumulation) to mirror MXU precision;
# bias is kept and the BN math stays in f32.
# ---------------------------------------------------------------------------
def ref_forward(x, w, b, gamma, beta, eps=1e-3):
    w_oihw = jnp.transpose(w[:, :, ::-1, ::-1], (1, 0, 2, 3)).astype(jnp.bfloat16)
    y = jax.lax.conv_general_dilated(
        x.astype(jnp.bfloat16), w_oihw, window_strides=(1, 1),
        padding=((1, 2), (1, 2)), lhs_dilation=(2, 2),
        dimension_numbers=("NCHW", "OIHW", "NCHW"),
        preferred_element_type=jnp.float32)
    y = y + b[None, :, None, None]
    mean = y.mean(axis=(0, 2, 3), keepdims=True)
    var = ((y - mean) ** 2).mean(axis=(0, 2, 3), keepdims=True)
    y = (y - mean) * jax.lax.rsqrt(var + eps) * gamma[None, :, None, None] \
        + beta[None, :, None, None]
    return jnp.maximum(y, 0.0)


if __name__ == "__main__":
    N, Cin, Cout, H, W = 2, 4, 8, 16, 16
    key = jax.random.PRNGKey(0)
    k1, k2, k3, k4, k5 = jax.random.split(key, 5)

    x = jax.random.normal(k1, (N, Cin, H, W), jnp.float32)
    w = 0.1 * jax.random.normal(k2, (Cin, Cout, 3, 3), jnp.float32)
    b = 0.1 * jax.random.normal(k3, (Cout,), jnp.float32)
    gamma = 1.0 + 0.1 * jax.random.normal(k4, (Cout,), jnp.float32)
    beta = 0.1 * jax.random.normal(k5, (Cout,), jnp.float32)

    ref = jax.block_until_ready(ref_forward(x, w, b, gamma, beta))

    # row_tile=4 -> grid (N, 2, 2): exercises the parallel row-split AND the
    # BN-stat accumulation across row tiles (plus the next-row halo path).
    out = jax.block_until_ready(
        upsampler_block(x, w, b, gamma, beta, row_tile=4))
    assert out.shape == (N, Cout, 2 * H, 2 * W), out.shape
    # Tolerance reflects the bf16 conv intermediate (reference keeps the conv
    # output in f32 after the bf16 MXU matmul).
    np.testing.assert_allclose(np.asarray(out), np.asarray(ref),
                               atol=2e-2, rtol=2e-2)

    # Default (generation-aware) planning path.
    out2 = jax.block_until_ready(upsampler_block(x, w, b, gamma, beta))
    assert out2.shape == (N, Cout, 2 * H, 2 * W), out2.shape
    np.testing.assert_allclose(np.asarray(out2), np.asarray(ref),
                               atol=2e-2, rtol=2e-2)

    print("KERNEL_OK")
</pallas_src>

<mosaic_0001>
module attributes {stable_mosaic.version = 11 : i64} {
  func.func @_conv_stats_kernel(%arg0: i32, %arg1: i32, %arg2: i32, %arg3: memref<1x4x17x4xbf16, #tpu.memory_space<vmem>>, %arg4: memref<1x1x17x4xbf16, #tpu.memory_space<vmem>>, %arg5: memref<16x32xbf16, #tpu.memory_space<vmem>>, %arg6: memref<1x4x16x32xbf16, #tpu.memory_space<vmem>>, %arg7: memref<1x1x1x32xf32, #tpu.memory_space<vmem>>, %arg8: memref<1x1x1x32xf32, #tpu.memory_space<vmem>>) attributes {dimension_semantics = [#tpu.dimension_semantics<parallel>, #tpu.dimension_semantics<parallel>, #tpu.dimension_semantics<arbitrary>], iteration_bounds = array<i64: 2, 2, 2>, scalar_prefetch = 0 : i64, scratch_operands = 0 : i64, tpu.core_type = #tpu.core_type<tc>, window_params = [{transform_indices = @transform_0, window_bounds = array<i64: 1, 4, 17, 4>}, {transform_indices = @transform_1, window_bounds = array<i64: 1, 1, 17, 4>}, {pipeline_mode = #tpu.pipeline_mode<synchronous>, transform_indices = @transform_2, window_bounds = array<i64: 16, 32>}, {transform_indices = @transform_3, window_bounds = array<i64: 1, 4, 16, 32>}, {transform_indices = @transform_4, window_bounds = array<i64: 1, 1, 1, 32>}, {transform_indices = @transform_5, window_bounds = array<i64: 1, 1, 1, 32>}]} {
    %c0 = arith.constant 0 : index
    %c0_0 = arith.constant 0 : index
    %c0_1 = arith.constant 0 : index
    %c0_2 = arith.constant 0 : index
    %0 = vector.load %arg3[%c0, %c0_0, %c0_1, %c0_2] : memref<1x4x17x4xbf16, #tpu.memory_space<vmem>>, vector<1x4x17x4xbf16>
    %1 = vector.shape_cast %0 : vector<1x4x17x4xbf16> to vector<4x17x4xbf16>
    %2 = vector.extract_strided_slice %1 {offsets = [1, 0, 0], sizes = [3, 17, 4], strides = [1, 1, 1]} : vector<4x17x4xbf16> to vector<3x17x4xbf16>
    %c0_3 = arith.constant 0 : index
    %c0_4 = arith.constant 0 : index
    %c0_5 = arith.constant 0 : index
    %c0_6 = arith.constant 0 : index
    %3 = vector.load %arg4[%c0_3, %c0_4, %c0_5, %c0_6] : memref<1x1x17x4xbf16, #tpu.memory_space<vmem>>, vector<1x1x17x4xbf16>
    %4 = vector.shape_cast %3 : vector<1x1x17x4xbf16> to vector<1x17x4xbf16>
    %5 = tpu.concatenate %2, %4 in 0 : vector<3x17x4xbf16>, vector<1x17x4xbf16> -> vector<4x17x4xbf16>
    %6 = vector.extract_strided_slice %1 {offsets = [0, 0, 0], sizes = [4, 16, 4], strides = [1, 1, 1]} : vector<4x17x4xbf16> to vector<4x16x4xbf16>
    %7 = vector.extract_strided_slice %1 {offsets = [0, 1, 0], sizes = [4, 16, 4], strides = [1, 1, 1]} : vector<4x17x4xbf16> to vector<4x16x4xbf16>
    %8 = vector.extract_strided_slice %5 {offsets = [0, 0, 0], sizes = [4, 16, 4], strides = [1, 1, 1]} : vector<4x17x4xbf16> to vector<4x16x4xbf16>
    %9 = vector.extract_strided_slice %5 {offsets = [0, 1, 0], sizes = [4, 16, 4], strides = [1, 1, 1]} : vector<4x17x4xbf16> to vector<4x16x4xbf16>
    %10 = tpu.concatenate %6, %7, %8, %9 in 2 : vector<4x16x4xbf16>, vector<4x16x4xbf16>, vector<4x16x4xbf16>, vector<4x16x4xbf16> -> vector<4x16x16xbf16>
    %11 = vector.shape_cast %10 : vector<4x16x16xbf16> to vector<64x16xbf16>
    %c0_7 = arith.constant 0 : index
    %c0_8 = arith.constant 0 : index
    %12 = vector.load %arg5[%c0_7, %c0_8] : memref<16x32xbf16, #tpu.memory_space<vmem>>, vector<16x32xbf16>
    %cst = arith.constant dense<0.000000e+00> : vector<64x32xf32>
    %13 = tpu.matmul %11, %12, %cst {dimension_numbers = #tpu.dot_dimension_numbers<[1], [0], [0], [1], [0, 0, 1, 1], [], []>} : vector<64x16xbf16>, vector<16x32xbf16>, vector<64x32xf32> -> vector<64x32xf32>
    %14 = vector.shape_cast %13 : vector<64x32xf32> to vector<1x4x16x32xf32>
    %15 = arith.truncf %14 : vector<1x4x16x32xf32> to vector<1x4x16x32xbf16>
    %c0_9 = arith.constant 0 : index
    %c0_10 = arith.constant 0 : index
    %c0_11 = arith.constant 0 : index
    %c0_12 = arith.constant 0 : index
    %16 = vector.load %arg6[%c0_9, %c0_10, %c0_11, %c0_12] : memref<1x4x16x32xbf16, #tpu.memory_space<vmem>>, vector<1x4x16x32xbf16>
    tpu.vector_store %arg6[%c0_9, %c0_10, %c0_11, %c0_12], %15 {strides = array<i32>} : memref<1x4x16x32xbf16, #tpu.memory_space<vmem>>, vector<1x4x16x32xbf16>,
    %c0_i32 = arith.constant 0 : i32
    %17 = arith.cmpi eq, %arg2, %c0_i32 : i32
    %18 = arith.extui %17 : i1 to i32
    %c0_i32_13 = arith.constant 0 : i32
    %19 = arith.cmpi ne, %18, %c0_i32_13 : i32
    scf.if %19 {
      %cst_32 = arith.constant 0.000000e+00 : f32
      %31 = vector.broadcast %cst_32 : f32 to vector<1x1x1x32xf32>
      %c0_33 = arith.constant 0 : index
      %c0_34 = arith.constant 0 : index
      %c0_35 = arith.constant 0 : index
      %c0_36 = arith.constant 0 : index
      %32 = vector.load %arg7[%c0_33, %c0_34, %c0_35, %c0_36] : memref<1x1x1x32xf32, #tpu.memory_space<vmem>>, vector<1x1x1x32xf32>
      tpu.vector_store %arg7[%c0_33, %c0_34, %c0_35, %c0_36], %31 {strides = array<i32>} : memref<1x1x1x32xf32, #tpu.memory_space<vmem>>, vector<1x1x1x32xf32>,
      %cst_37 = arith.constant 0.000000e+00 : f32
      %33 = vector.broadcast %cst_37 : f32 to vector<1x1x1x32xf32>
      %c0_38 = arith.constant 0 : index
      %c0_39 = arith.constant 0 : index
      %c0_40 = arith.constant 0 : index
      %c0_41 = arith.constant 0 : index
      %34 = vector.load %arg8[%c0_38, %c0_39, %c0_40, %c0_41] : memref<1x1x1x32xf32, #tpu.memory_space<vmem>>, vector<1x1x1x32xf32>
      tpu.vector_store %arg8[%c0_38, %c0_39, %c0_40, %c0_41], %33 {strides = array<i32>} : memref<1x1x1x32xf32, #tpu.memory_space<vmem>>, vector<1x1x1x32xf32>,
    } else {
    }
    %c0_14 = arith.constant 0 : index
    %c0_15 = arith.constant 0 : index
    %c0_16 = arith.constant 0 : index
    %c0_17 = arith.constant 0 : index
    %20 = vector.load %arg7[%c0_14, %c0_15, %c0_16, %c0_17] : memref<1x1x1x32xf32, #tpu.memory_space<vmem>>, vector<1x1x1x32xf32>
    %cst_18 = arith.constant dense<0.000000e+00> : vector<32xf32>
    %21 = vector.multi_reduction <add>, %13, %cst_18 [0] : vector<64x32xf32> to vector<32xf32>
    %22 = vector.shape_cast %21 : vector<32xf32> to vector<1x1x1x32xf32>
    %23 = arith.addf %20, %22 : vector<1x1x1x32xf32>
    %c0_19 = arith.constant 0 : index
    %c0_20 = arith.constant 0 : index
    %c0_21 = arith.constant 0 : index
    %c0_22 = arith.constant 0 : index
    %24 = vector.load %arg7[%c0_19, %c0_20, %c0_21, %c0_22] : memref<1x1x1x32xf32, #tpu.memory_space<vmem>>, vector<1x1x1x32xf32>
    tpu.vector_store %arg7[%c0_19, %c0_20, %c0_21, %c0_22], %23 {strides = array<i32>} : memref<1x1x1x32xf32, #tpu.memory_space<vmem>>, vector<1x1x1x32xf32>,
    %c0_23 = arith.constant 0 : index
    %c0_24 = arith.constant 0 : index
    %c0_25 = arith.constant 0 : index
    %c0_26 = arith.constant 0 : index
    %25 = vector.load %arg8[%c0_23, %c0_24, %c0_25, %c0_26] : memref<1x1x1x32xf32, #tpu.memory_space<vmem>>, vector<1x1x1x32xf32>
    %26 = arith.mulf %13, %13 : vector<64x32xf32>
    %cst_27 = arith.constant dense<0.000000e+00> : vector<32xf32>
    %27 = vector.multi_reduction <add>, %26, %cst_27 [0] : vector<64x32xf32> to vector<32xf32>
    %28 = vector.shape_cast %27 : vector<32xf32> to vector<1x1x1x32xf32>
    %29 = arith.addf %25, %28 : vector<1x1x1x32xf32>
    %c0_28 = arith.constant 0 : index
    %c0_29 = arith.constant 0 : index
    %c0_30 = arith.constant 0 : index
    %c0_31 = arith.constant 0 : index
    %30 = vector.load %arg8[%c0_28, %c0_29, %c0_30, %c0_31] : memref<1x1x1x32xf32, #tpu.memory_space<vmem>>, vector<1x1x1x32xf32>
    tpu.vector_store %arg8[%c0_28, %c0_29, %c0_30, %c0_31], %29 {strides = array<i32>} : memref<1x1x1x32xf32, #tpu.memory_space<vmem>>, vector<1x1x1x32xf32>,
    return
  }
  func.func @transform_0(%arg0: i32, %arg1: i32, %arg2: i32) -> (i32, i32, i32, i32) {
    %c2_i32 = arith.constant 2 : i32
    %0 = arith.muli %arg1, %c2_i32 : i32
    %1 = arith.addi %0, %arg2 : i32
    %c0_i32 = arith.constant 0 : i32
    %c0_i32_0 = arith.constant 0 : i32
    %c0_i32_1 = arith.constant 0 : i32
    return %arg0, %1, %c0_i32, %c0_i32_0 : i32, i32, i32, i32
  }
  func.func @transform_1(%arg0: i32, %arg1: i32, %arg2: i32) -> (i32, i32, i32, i32) {
    %c2_i32 = arith.constant 2 : i32
    %0 = arith.muli %arg1, %c2_i32 : i32
    %1 = arith.addi %0, %arg2 : i32
    %c0_i32 = arith.constant 0 : i32
    %c0_i32_0 = arith.constant 0 : i32
    %c0_i32_1 = arith.constant 0 : i32
    return %arg0, %1, %c0_i32, %c0_i32_0 : i32, i32, i32, i32
  }
  func.func @transform_2(%arg0: i32, %arg1: i32, %arg2: i32) -> (i32, i32) {
    %c0_i32 = arith.constant 0 : i32
    %c0_i32_0 = arith.constant 0 : i32
    %c0_i32_1 = arith.constant 0 : i32
    return %c0_i32, %c0_i32_0 : i32, i32
  }
  func.func @transform_3(%arg0: i32, %arg1: i32, %arg2: i32) -> (i32, i32, i32, i32) {
    %c2_i32 = arith.constant 2 : i32
    %0 = arith.muli %arg1, %c2_i32 : i32
    %1 = arith.addi %0, %arg2 : i32
    %c0_i32 = arith.constant 0 : i32
    %c0_i32_0 = arith.constant 0 : i32
    %c0_i32_1 = arith.constant 0 : i32
    return %arg0, %1, %c0_i32, %c0_i32_0 : i32, i32, i32, i32
  }
  func.func @transform_4(%arg0: i32, %arg1: i32, %arg2: i32) -> (i32, i32, i32, i32) {
    %c0_i32 = arith.constant 0 : i32
    %c0_i32_0 = arith.constant 0 : i32
    %c0_i32_1 = arith.constant 0 : i32
    return %arg0, %arg1, %c0_i32, %c0_i32_0 : i32, i32, i32, i32
  }
  func.func @transform_5(%arg0: i32, %arg1: i32, %arg2: i32) -> (i32, i32, i32, i32) {
    %c0_i32 = arith.constant 0 : i32
    %c0_i32_0 = arith.constant 0 : i32
    %c0_i32_1 = arith.constant 0 : i32
    return %arg0, %arg1, %c0_i32, %c0_i32_0 : i32, i32, i32, i32
  }
}

</mosaic_0001>

<llo_original>
// kernel: _upsampler_impl.1
$region0: #{_upsampler_impl.1}
  #allocation0 [shape = 'u32[]', space=smem, size = 0x4, offset = 0x4, fixed_abs, tag = 'smem constant byte address 0x4 - core index']
  #allocation1 [shape = 'u32[144,128]{1,0:T(1,128)}', space=vmem, size = 0x12000, scoped, tag = 'internal scratch']
  %s0 = inlined_call_operand.vmem [shape: bf16[2,16,17,4], index: 0, kind: input, shape index: {}]
  %s1 = inlined_call_operand.vmem [shape: bf16[2,4,17,4], index: 1, kind: input, shape index: {}]
  %s2 = inlined_call_operand.vmem [shape: bf16[16,32], index: 2, kind: input, shape index: {}]
  %s3 = inlined_call_operand.vmem [shape: bf16[2,16,16,32], index: 3, kind: output, shape index: {0}]
  %s4 = inlined_call_operand.vmem [shape: f32[2,2,1,32], index: 4, kind: output, shape index: {1}]
  %s5 = inlined_call_operand.vmem [shape: f32[2,2,1,32], index: 5, kind: output, shape index: {2}]
  %6 = xla_tuple %s3, %s4, %s5
  %s7 = sld [smem:[#allocation0]]
  $region65: #{_upsampler_impl.1} parent=0
    _
  %s9 = ssub.s32 1, %s7
  %s10 = scalar_select 0, %s9, %s7
  loop: start=0, step=1, limit=10
  $region2: #{_upsampler_impl.1} parent=0 // loop_pre_header
    _
  $region3: #{_upsampler_impl.1} parent=0 // loop_header
    %s12 = sphi 0, %s16
    %p13 = scmp.ge.s32.totalorder %s12, 10
    %s19 = sphi 0, %s38
    %s20 = sphi 0, %s34
    %s21 = sphi 0, %s30
    %s22 = sphi 0, %s19
    %s23 = sphi 0, %s20
    %s24 = sphi 0, %s21
    %s25 = sphi 0, %s22
    %s26 = sphi 0, %s23
    %s27 = sphi 0, %s24
    %s47 = sphi 0, %s49
    %s50 = sphi 0, %s47
    %s51 = sphi 0, %s50
    %s67 = sphi 0, %s51
    %s79 = sphi 0, %s81
    %s82 = sphi 0, %s79
    %s83 = sphi 0, %s82
    %s99 = sphi 0, %s83
    %s103 = sphi 0, %s103
    %s105 = sphi 0, %s103
    %s106 = sphi 0, %s105
    %s120 = sphi 0, %s106
    %s132 = sphi 0, %s134
    %s135 = sphi 0, %s132
    %s136 = sphi 0, %s135
    %s152 = sphi 0, %s136
    %s160 = sphi 0, %s162
    %s163 = sphi 0, %s160
    %s164 = sphi 0, %s163
    %s180 = sphi 0, %s164
    %s188 = sphi 0, %s190
    %s191 = sphi 0, %s188
    %s192 = sphi 0, %s191
    %s208 = sphi 0, %s192
  $region4: #{_upsampler_impl.1} parent=0 // loop_header_branch
    %15 = sbr.rel (%p13) target = $region8
  $region5: #{_upsampler_impl.1} parent=0 // loop_body
    %s17 = ssub.s32 %s12, 1
    %s18 = ssub.s32 %s12, 2
    %s28 = sadd.s32 1, %s21
    %p29 = scmp.ge.s32.totalorder %s28, 2
    %s30 = scalar_select %p29, 0, %s28
    %s31 = sadd.s32 1, %s20
    %s32 = scalar_select %p29, %s31, %s20
    %p33 = scmp.ge.s32.totalorder %s32, 2
    %s34 = scalar_select %p33, 0, %s32
    %s35 = sadd.s32 1, %s19
    %s36 = scalar_select %p33, %s35, %s19
    %p37 = scmp.ge.s32.totalorder %s36, 2
    %s38 = scalar_select %p37, 0, %s36
    %s39 = smul.u32 %s20, 2
    %s40 = sadd.s32 %s39, %s21
    %s41 = smul.u32 %s34, 2
    %s42 = sadd.s32 %s41, %s30
    %s43 = ssub.s32 %s19, %s38
    %s44 = ssub.s32 %s40, %s42
    %s45 = sor.u32 %s43, %s44
    %p46 = scmp.eq.s32.totalorder %s45, 0
    %s48 = sadd.s32 %s47, 1
    %s49 = scalar_select %p46, %s47, %s48
    %p52 = pneg %p46
    %p53 = scmp.eq.s32.totalorder %s12, 7
    %p54 = por %p52, %p53
    %p55 = scmp.ne.s32.totalorder %s47, %s50
    %p56 = scmp.eq.s32.totalorder %s12, 0
    %p57 = por %p55, %p56
    %p58 = scmp.ne.s32.totalorder %s47, %s50
    %p59 = scmp.eq.s32.totalorder %s17, 7
    %p60 = por %p58, %p59
    %p61 = scmp.ne.s32.totalorder %s50, %s51
    %p62 = scmp.eq.s32.totalorder %s17, 0
    %p63 = por %p61, %p62
    %p64 = scmp.ne.s32.totalorder %s50, %s51
    %p65 = scmp.eq.s32.totalorder %s18, 7
    %p66 = por %p64, %p65
    %p68 = scmp.ne.s32.totalorder %s51, %s67
    %p69 = scmp.eq.s32.totalorder %s18, 0
    %p70 = por %p68, %p69
    %s71 = smul.u32 %s20, 2
    %s72 = sadd.s32 %s71, %s21
    %s73 = smul.u32 %s34, 2
    %s74 = sadd.s32 %s73, %s30
    %s75 = ssub.s32 %s19, %s38
    %s76 = ssub.s32 %s72, %s74
    %s77 = sor.u32 %s75, %s76
    %p78 = scmp.eq.s32.totalorder %s77, 0
    %s80 = sadd.s32 %s79, 1
    %s81 = scalar_select %p78, %s79, %s80
    %p84 = pneg %p78
    %p85 = scmp.eq.s32.totalorder %s12, 7
    %p86 = por %p84, %p85
    %p87 = scmp.ne.s32.totalorder %s79, %s82
    %p88 = scmp.eq.s32.totalorder %s12, 0
    %p89 = por %p87, %p88
    %p90 = scmp.ne.s32.totalorder %s79, %s82
    %p91 = scmp.eq.s32.totalorder %s17, 7
    %p92 = por %p90, %p91
    %p93 = scmp.ne.s32.totalorder %s82, %s83
    %p94 = scmp.eq.s32.totalorder %s17, 0
    %p95 = por %p93, %p94
    %p96 = scmp.ne.s32.totalorder %s82, %s83
    %p97 = scmp.eq.s32.totalorder %s18, 7
    %p98 = por %p96, %p97
    %p100 = scmp.ne.s32.totalorder %s83, %s99
    %p101 = scmp.eq.s32.totalorder %s18, 0
    %p102 = por %p100, %p101
    %s104 = sadd.s32 %s103, 1
    %p107 = scmp.eq.s32.totalorder %s12, 7
    %p108 = scmp.ne.s32.totalorder %s103, %s105
    %p109 = scmp.eq.s32.totalorder %s12, 0
    %p110 = por %p108, %p109
    %p111 = scmp.ne.s32.totalorder %s103, %s105
    %p112 = scmp.eq.s32.totalorder %s17, 7
    %p113 = por %p111, %p112
    %p114 = scmp.ne.s32.totalorder %s105, %s106
    %p115 = scmp.eq.s32.totalorder %s17, 0
    %p116 = por %p114, %p115
    %p117 = scmp.ne.s32.totalorder %s105, %s106
    %p118 = scmp.eq.s32.totalorder %s18, 7
    %p119 = por %p117, %p118
    %p121 = scmp.ne.s32.totalorder %s106, %s120
    %p122 = scmp.eq.s32.totalorder %s18, 0
    %p123 = por %p121, %p122
    %s124 = smul.u32 %s20, 2
    %s125 = sadd.s32 %s124, %s21
    %s126 = smul.u32 %s34, 2
    %s127 = sadd.s32 %s126, %s30
    %s128 = ssub.s32 %s19, %s38
    %s129 = ssub.s32 %s125, %s127
    %s130 = sor.u32 %s128, %s129
    %p131 = scmp.eq.s32.totalorder %s130, 0
    %s133 = sadd.s32 %s132, 1
    %s134 = scalar_select %p131, %s132, %s133
    %p137 = pneg %p131
    %p138 = scmp.eq.s32.totalorder %s12, 7
    %p139 = por %p137, %p138
    %p140 = scmp.ne.s32.totalorder %s132, %s135
    %p141 = scmp.eq.s32.totalorder %s12, 0
    %p142 = por %p140, %p141
    %p143 = scmp.ne.s32.totalorder %s132, %s135
    %p144 = scmp.eq.s32.totalorder %s17, 7
    %p145 = por %p143, %p144
    %p146 = scmp.ne.s32.totalorder %s135, %s136
    %p147 = scmp.eq.s32.totalorder %s17, 0
    %p148 = por %p146, %p147
    %p149 = scmp.ne.s32.totalorder %s135, %s136
    %p150 = scmp.eq.s32.totalorder %s18, 7
    %p151 = por %p149, %p150
    %p153 = scmp.ne.s32.totalorder %s136, %s152
    %p154 = scmp.eq.s32.totalorder %s18, 0
    %p155 = por %p153, %p154
    %s156 = ssub.s32 %s19, %s38
    %s157 = ssub.s32 %s20, %s34
    %s158 = sor.u32 %s156, %s157
    %p159 = scmp.eq.s32.totalorder %s158, 0
    %s161 = sadd.s32 %s160, 1
    %s162 = scalar_select %p159, %s160, %s161
    %p165 = pneg %p159
    %p166 = scmp.eq.s32.totalorder %s12, 7
    %p167 = por %p165, %p166
    %p168 = scmp.ne.s32.totalorder %s160, %s163
    %p169 = scmp.eq.s32.totalorder %s12, 0
    %p170 = por %p168, %p169
    %p171 = scmp.ne.s32.totalorder %s160, %s163
    %p172 = scmp.eq.s32.totalorder %s17, 7
    %p173 = por %p171, %p172
    %p174 = scmp.ne.s32.totalorder %s163, %s164
    %p175 = scmp.eq.s32.totalorder %s17, 0
    %p176 = por %p174, %p175
    %p177 = scmp.ne.s32.totalorder %s163, %s164
    %p178 = scmp.eq.s32.totalorder %s18, 7
    %p179 = por %p177, %p178
    %p181 = scmp.ne.s32.totalorder %s164, %s180
    %p182 = scmp.eq.s32.totalorder %s18, 0
    %p183 = por %p181, %p182
    %s184 = ssub.s32 %s19, %s38
    %s185 = ssub.s32 %s20, %s34
    %s186 = sor.u32 %s184, %s185
    %p187 = scmp.eq.s32.totalorder %s186, 0
    %s189 = sadd.s32 %s188, 1
    %s190 = scalar_select %p187, %s188, %s189
    %p193 = pneg %p187
    %p194 = scmp.eq.s32.totalorder %s12, 7
    %p195 = por %p193, %p194
    %p196 = scmp.ne.s32.totalorder %s188, %s191
    %p197 = scmp.eq.s32.totalorder %s12, 0
    %p198 = por %p196, %p197
    %p199 = scmp.ne.s32.totalorder %s188, %s191
    %p200 = scmp.eq.s32.totalorder %s17, 7
    %p201 = por %p199, %p200
    %p202 = scmp.ne.s32.totalorder %s191, %s192
    %p203 = scmp.eq.s32.totalorder %s17, 0
    %p204 = por %p202, %p203
    %p205 = scmp.ne.s32.totalorder %s191, %s192
    %p206 = scmp.eq.s32.totalorder %s18, 7
    %p207 = por %p205, %p206
    %p209 = scmp.ne.s32.totalorder %s192, %s208
    %p210 = scmp.eq.s32.totalorder %s18, 0
    %p211 = por %p209, %p210
    %p212 = scmp.le.s32.totalorder 1, %s12
    %p213 = scmp.lt.s32.totalorder %s12, 9
    %p214 = pnand %p212, %p213
    %p215 = pneg %p214
    // Predicated region
    $region9: #{_upsampler_impl.1} parent=5 // pred_check
      _
    $region10: #{_upsampler_impl.1} parent=5 // pred_check_branch
      %217 = sbr.rel (%p214) target = $region12
    $region11: #{_upsampler_impl.1} parent=5 // pred_region
      %s218 = ssub.s32 %s12, 1
      // Predicated region
      $region13: #{_upsampler_impl.1} parent=11 // pred_check
        %p219 = pneg %p116
      $region14: #{_upsampler_impl.1} parent=11 // pred_check_branch
        %221 = sbr.rel (%p219) target = $region16
      $region15: #{_upsampler_impl.1} parent=11 // pred_region
        _
      $region16: #{_upsampler_impl.1} parent=11 // pred_fallthru
        _
    $region12: #{_upsampler_impl.1} parent=5 // pred_fallthru
      _
    %p222 = scmp.lt.s32.totalorder %s12, 8
    // Predicated region
    $region17: #{_upsampler_impl.1} parent=5 // pred_check
      %p223 = pneg %p222
    $region18: #{_upsampler_impl.1} parent=5 // pred_check_branch
      %225 = sbr.rel (%p223) target = $region20
    $region19: #{_upsampler_impl.1} parent=5 // pred_region
      // Predicated region
      $region21: #{_upsampler_impl.1} parent=19 // pred_check
        %p226 = pneg %p57
      $region22: #{_upsampler_impl.1} parent=19 // pred_check_branch
        %228 = sbr.rel (%p226) target = $region24
      $region23: #{_upsampler_impl.1} parent=19 // pred_region
        %s229 = smul.u32 %s20, 2
        %s230 = sadd.s32 %s229, %s21
        %s231 = smul.u32 4, %s230
        %p232 = scmp.lt.s32.totalorder %s19, 1
        %s233 = scalar_select %p232, %s19, 1
        %p234 = scmp.lt.s32.totalorder %s231, 15
        %s235 = scalar_select %p234, %s231, 15
        %s236 = smul.addr %s235, 3
        %s237 = smul.addr %s233, 48
        %s238 = sadd.s32 %s236, %s237
        %s239 = smul.addr %s238, 4
        %s240 = scalar_lea.vmem %s0, %s239
        %s241 = smul.u32 %s20, 2
        %s242 = sadd.s32 %s241, %s21
        %s243 = smul.u32 4, %s242
      $region24: #{_upsampler_impl.1} parent=19 // pred_fallthru
        _
      // Predicated region
      $region25: #{_upsampler_impl.1} parent=19 // pred_check
        %p244 = pneg %p89
      $region26: #{_upsampler_impl.1} parent=19 // pred_check_branch
        %246 = sbr.rel (%p244) target = $region28
      $region27: #{_upsampler_impl.1} parent=19 // pred_region
        %s247 = smul.u32 %s20, 2
        %s248 = sadd.s32 %s247, %s21
        %p249 = scmp.lt.s32.totalorder %s19, 1
        %s250 = scalar_select %p249, %s19, 1
        %p251 = scmp.lt.s32.totalorder %s248, 3
        %s252 = scalar_select %p251, %s248, 3
        %s253 = smul.addr %s252, 3
        %s254 = smul.addr %s250, 12
        %s255 = sadd.s32 %s253, %s254
        %s256 = smul.addr %s255, 4
        %s257 = scalar_lea.vmem %s1, %s256
        %s258 = smul.u32 %s20, 2
        %s259 = sadd.s32 %s258, %s21
      $region28: #{_upsampler_impl.1} parent=19 // pred_fallthru
        _
    $region20: #{_upsampler_impl.1} parent=5 // pred_fallthru
      _
    %p260 = scmp.le.s32.totalorder 1, %s12
    %p261 = scmp.lt.s32.totalorder %s12, 9
    %p262 = pnand %p260, %p261
    %p263 = pneg %p262
    // Predicated region
    $region29: #{_upsampler_impl.1} parent=5 // pred_check
      _
    $region30: #{_upsampler_impl.1} parent=5 // pred_check_branch
      %265 = sbr.rel (%p262) target = $region32
    $region31: #{_upsampler_impl.1} parent=5 // pred_region
      %s266 = ssub.s32 %s12, 1
      %s267 = smul.u32 %s23, 2
      %s268 = sadd.s32 %s267, %s24
      %s269 = smul.u32 4, %s268
      %p270 = scmp.lt.s32.totalorder %s22, 1
      %s271 = scalar_select %p270, %s22, 1
      %p272 = scmp.lt.s32.totalorder %s269, 15
      %s273 = scalar_select %p272, %s269, 15
      %s274 = smul.addr %s273, 3
      %s275 = smul.addr %s271, 48
      %s276 = sadd.s32 %s274, %s275
      %s277 = smul.addr %s276, 4
      %s278 = scalar_lea.vmem %s0, %s277
      %p279 = pneg %p63
      %p280 = pneg %p60
      %s281 = smul.u32 %s23, 2
      %s282 = sadd.s32 %s281, %s24
      %p283 = scmp.lt.s32.totalorder %s22, 1
      %s284 = scalar_select %p283, %s22, 1
      %p285 = scmp.lt.s32.totalorder %s282, 3
      %s286 = scalar_select %p285, %s282, 3
      %s287 = smul.addr %s286, 3
      %s288 = smul.addr %s284, 12
      %s289 = sadd.s32 %s287, %s288
      %s290 = smul.addr %s289, 4
      %s291 = scalar_lea.vmem %s1, %s290
      %p292 = pneg %p95
      %p293 = pneg %p92
      %p294 = pneg %p116
      %p295 = pneg %p113
      %p296 = pneg %p148
      %p297 = pneg %p145
      %s298 = smul.u32 %s23, 2
      %s299 = sadd.s32 %s298, %s24
      %s300 = smul.u32 4, %s299
      %p301 = scmp.lt.s32.totalorder %s22, 1
      %s302 = scalar_select %p301, %s22, 1
      %p303 = scmp.lt.s32.totalorder %s300, 15
      %s304 = scalar_select %p303, %s300, 15
      %s305 = smul.addr %s304, 2
      %s306 = smul.addr %s302, 32
      %s307 = sadd.s32 %s305, %s306
      %s308 = smul.addr %s307, 4
      %s309 = scalar_lea.vmem %s3, %s308
      %p310 = pneg %p176
      %p311 = pneg %p173
      %p312 = scmp.lt.s32.totalorder %s22, 1
      %s313 = scalar_select %p312, %s22, 1
      %p314 = scmp.lt.s32.totalorder %s23, 1
      %s315 = scalar_select %p314, %s23, 1
      %s316 = smul.addr %s313, 2
      %s317 = sadd.s32 %s315, %s316
      %s318 = scalar_lea.vmem %s4, %s317
      %p319 = pneg %p204
      %p320 = pneg %p201
      %p321 = scmp.lt.s32.totalorder %s22, 1
      %s322 = scalar_select %p321, %s22, 1
      %p323 = scmp.lt.s32.totalorder %s23, 1
      %s324 = scalar_select %p323, %s23, 1
      %s325 = smul.addr %s322, 2
      %s326 = sadd.s32 %s324, %s325
      %s327 = scalar_lea.vmem %s5, %s326
      %s328 = smul.u32 %s23, 2
      %s329 = sadd.s32 %s328, %s24
      %s330 = smul.u32 4, %s329
      %p331 = scmp.lt.s32.totalorder %s22, 1
      %s332 = scalar_select %p331, %s22, 1
      %p333 = scmp.lt.s32.totalorder %s330, 15
      %s334 = scalar_select %p333, %s330, 15
      %s335 = smul.addr %s334, 3
      %s336 = smul.addr %s332, 48
      %s337 = sadd.s32 %s335, %s336
      %s338 = smul.addr %s337, 4
      %s339 = scalar_lea.vmem %s0, %s338
      %s340 = smul.u32 %s23, 2
      %s341 = sadd.s32 %s340, %s24
      %s342 = smul.u32 4, %s341
      %s343 = smul.u32 %s23, 2
      %s344 = sadd.s32 %s343, %s24
      %p345 = scmp.lt.s32.totalorder %s22, 1
      %s346 = scalar_select %p345, %s22, 1
      %p347 = scmp.lt.s32.totalorder %s344, 3
      %s348 = scalar_select %p347, %s344, 3
      %s349 = smul.addr %s348, 3
      %s350 = smul.addr %s346, 12
      %s351 = sadd.s32 %s349, %s350
      %s352 = smul.addr %s351, 4
      %s353 = scalar_lea.vmem %s1, %s352
      %s354 = smul.u32 %s23, 2
      %s355 = sadd.s32 %s354, %s24
      %s356 = smul.u32 %s23, 2
      %s357 = sadd.s32 %s356, %s24
      %s358 = smul.u32 4, %s357
      %p359 = scmp.lt.s32.totalorder %s22, 1
      %s360 = scalar_select %p359, %s22, 1
      %p361 = scmp.lt.s32.totalorder %s358, 15
      %s362 = scalar_select %p361, %s358, 15
      %s363 = smul.addr %s362, 2
      %s364 = smul.addr %s360, 32
      %s365 = sadd.s32 %s363, %s364
      %s366 = smul.addr %s365, 4
      %s367 = scalar_lea.vmem %s3, %s366
      %s368 = smul.u32 %s23, 2
      %s369 = sadd.s32 %s368, %s24
      %s370 = smul.u32 4, %s369
      %p371 = scmp.lt.s32.totalorder %s22, 1
      %s372 = scalar_select %p371, %s22, 1
      %p373 = scmp.lt.s32.totalorder %s23, 1
      %s374 = scalar_select %p373, %s23, 1
      %s375 = smul.addr %s372, 2
      %s376 = sadd.s32 %s374, %s375
      %s377 = scalar_lea.vmem %s4, %s376
      %p378 = scmp.lt.s32.totalorder %s22, 1
      %s379 = scalar_select %p378, %s22, 1
      %p380 = scmp.lt.s32.totalorder %s23, 1
      %s381 = scalar_select %p380, %s23, 1
      %s382 = smul.addr %s379, 2
      %s383 = sadd.s32 %s381, %s382
      %s384 = scalar_lea.vmem %s5, %s383
      %v386 = vld [vmem:[%s339] sm:$0xf]
      %v387 = vld [vmem:[%s339 + $0x4] sm:$0xf]
      %v388 = vld [vmem:[%s339 + $0x8] sm:$0x1]
      %v389 = vld [vmem:[%s339 + $0xc] sm:$0xf]
      %v390 = vld [vmem:[%s339 + $0x10] sm:$0xf]
      %v391 = vld [vmem:[%s339 + $0x14] sm:$0x1]
      %v392 = vld [vmem:[%s339 + $0x18] sm:$0xf]
      %v393 = vld [vmem:[%s339 + $0x1c] sm:$0xf]
      %v394 = vld [vmem:[%s339 + $0x20] sm:$0x1]
      %v395 = vld [vmem:[%s339 + $0x24] sm:$0xf]
      %v396 = vld [vmem:[%s339 + $0x28] sm:$0xf]
      %v397 = vld [vmem:[%s339 + $0x2c] sm:$0x1]
      %v398 = vld [vmem:[%s353] sm:$0xf]
      %v399 = vld [vmem:[%s353 + $0x4] sm:$0xf]
      %v400 = vld [vmem:[%s353 + $0x8] sm:$0x1]
      %v409 = vunpack.c.l.b16 %v386
      %v410 = vunpack.c.l.b16 %v387
      %v411 = vunpack.c.l.b16 %v389
      %v412 = vunpack.c.l.b16 %v390
      %v413 = vunpack.c.l.b16 %v392
      %v414 = vunpack.c.l.b16 %v393
      %v415 = vunpack.c.l.b16 %v395
      %v416 = vunpack.c.l.b16 %v396
      %v417 = vpack.c.b16 %v410, %v409
      %v418 = vpack.c.b16 %v412, %v411
      %v419 = vpack.c.b16 %v414, %v413
      %v420 = vpack.c.b16 %v416, %v415
      %v425 = vunpack.c.l.b16 %v388
      %v426 = vunpack.c.l.b16 %v391
      %v427 = vunpack.c.l.b16 %v394
      %v428 = vunpack.c.l.b16 %v397
      %v429 = vpack.c.b16 %v425, %v425
      %v430 = vpack.c.b16 %v426, %v426
      %v431 = vpack.c.b16 %v427, %v427
      %v432 = vpack.c.b16 %v428, %v428
      %vm433 = vsmask.f32 7424
      %v435 = vshrl.u32 %v417, 16
      %v437 = vshll.u32 %v417, 16
      %v439 = vrot.slane %v437, 1
      %v440 = vor.u32 %v435, %v439
      %v442 = vshll.u32 %v429, 16
      %v444 = vrot.slane %v442, 1
      %v445 = vsel %vm433, %v440, %v444
      %v447 = vshrl.u32 %v418, 16
      %v449 = vshll.u32 %v418, 16
      %v451 = vrot.slane %v449, 1
      %v452 = vor.u32 %v447, %v451
      %v454 = vshll.u32 %v430, 16
      %v456 = vrot.slane %v454, 1
      %v457 = vsel %vm433, %v452, %v456
      %v459 = vshrl.u32 %v419, 16
      %v461 = vshll.u32 %v419, 16
      %v463 = vrot.slane %v461, 1
      %v464 = vor.u32 %v459, %v463
      %v466 = vshll.u32 %v431, 16
      %v468 = vrot.slane %v466, 1
      %v469 = vsel %vm433, %v464, %v468
      %v471 = vshrl.u32 %v420, 16
      %v473 = vshll.u32 %v420, 16
      %v475 = vrot.slane %v473, 1
      %v476 = vor.u32 %v471, %v475
      %v478 = vshll.u32 %v432, 16
      %v480 = vrot.slane %v478, 1
      %v481 = vsel %vm433, %v476, %v480
      %482 = vrot.lane.b32.xlu0 %v445, 4
      %v483 = vpop.permute.xlu0 %482
      %484 = vrot.lane.b32.xlu0 %v457, 4
      %v485 = vpop.permute.xlu0 %484
      %486 = vrot.lane.b32.xlu0 %v469, 4
      %v487 = vpop.permute.xlu0 %486
      %488 = vrot.lane.b32.xlu0 %v481, 4
      %v489 = vpop.permute.xlu0 %488
      %v492 = vunpack.c.l.b16 %v398
      %v493 = vunpack.c.l.b16 %v399
      %v494 = vpack.c.b16 %v493, %v492
      %495 = vrot.lane.b32.xlu0 %v418, 8
      %v496 = vpop.permute.xlu0 %495
      %497 = vrot.lane.b32.xlu0 %v419, 8
      %v498 = vpop.permute.xlu0 %497
      %499 = vrot.lane.b32.xlu0 %v420, 8
      %v500 = vpop.permute.xlu0 %499
      %501 = vrot.lane.b32.xlu0 %v494, 8
      %v502 = vpop.permute.xlu0 %501
      %v504 = vunpack.c.l.b16 %v400
      %v505 = vpack.c.b16 %v504, %v504
      %v507 = vshrl.u32 %v494, 16
      %v509 = vshll.u32 %v494, 16
      %v511 = vrot.slane %v509, 1
      %v512 = vor.u32 %v507, %v511
      %v514 = vshll.u32 %v505, 16
      %v516 = vrot.slane %v514, 1
      %v517 = vsel %vm433, %v512, %v516
      %518 = vrot.lane.b32.xlu0 %v457, 12
      %v519 = vpop.permute.xlu0 %518
      %520 = vrot.lane.b32.xlu0 %v469, 12
      %v521 = vpop.permute.xlu0 %520
      %522 = vrot.lane.b32.xlu0 %v481, 12
      %v523 = vpop.permute.xlu0 %522
      %524 = vrot.lane.b32.xlu0 %v517, 12
      %v525 = vpop.permute.xlu0 %524
      %vm526 = vcmask 31744
      %v528 = vsel %vm526, %v417, %v483
      %v530 = vsel %vm526, %v418, %v485
      %v532 = vsel %vm526, %v419, %v487
      %v534 = vsel %vm526, %v420, %v489
      %vm535 = vcmask 64512
      %v537 = vsel %vm535, %v528, %v496
      %v539 = vsel %vm535, %v530, %v498
      %v541 = vsel %vm535, %v532, %v500
      %v543 = vsel %vm535, %v534, %v502
      %vm544 = vcmask 97280
      %v546 = vsel %vm544, %v537, %v519
      %v548 = vsel %vm544, %v539, %v521
      %v550 = vsel %vm544, %v541, %v523
      %v552 = vsel %vm544, %v543, %v525
      %v553 = vld [vmem:[%s2] sm:$0xf]
      %v554 = vld [vmem:[%s2 + $0x4] sm:$0xf]
      %v557 = vunpack.c.l.b16 %v553
      %v558 = vunpack.c.l.b16 %v554
      %v559 = vpack.c.b16 %v558, %v557
      %vm561 = vcmask 130048
      %v562 = vsel %vm561, %v546, 0
      %v564 = vsel %vm561, %v548, 0
      %v566 = vsel %vm561, %v550, 0
      %v568 = vsel %vm561, %v552, 0
      %570 = vmatprep.subr.bf16.mxu0 0
      %571 = vmatpush1.bf16.msra.mxu0 %v559
      %572 = vmatprep.subr.bf16.mxu0 0
      %573 = vmatpush1.bf16.msra.mxu0 0
      %574 = vmatprep.subr.bf16.mxu0 0
      %575 = vmatpush1.bf16.msra.mxu0 0
      %576 = vmatprep.subr.bf16.mxu0 0
      %577 = vmatpush1.bf16.msra.mxu0 0
      %578 = vmatprep.subr.bf16.mxu0 0
      %579 = vmatpush1.bf16.msra.mxu0 0
      %580 = vmatprep.subr.bf16.mxu0 0
      %581 = vmatpush1.bf16.msra.mxu0 0
      %582 = vmatprep.subr.bf16.mxu0 0
      %583 = vmatpush1.bf16.msra.mxu0 0
      %584 = vmatprep.subr.bf16.mxu0 0
      %585 = vmatpush1.bf16.msra.mxu0 0
      %586 = vmatprep.subr.bf16.mxu0 0
      %587 = vmatpush1.bf16.msra.mxu0 0
      %588 = vmatprep.subr.bf16.mxu0 0
      %589 = vmatpush1.bf16.msra.mxu0 0
      %590 = vmatprep.subr.bf16.mxu0 0
      %591 = vmatpush1.bf16.msra.mxu0 0
      %592 = vmatprep.subr.bf16.mxu0 0
      %593 = vmatpush1.bf16.msra.mxu0 0
      %594 = vmatprep.subr.bf16.mxu0 0
      %595 = vmatpush1.bf16.msra.mxu0 0
      %596 = vmatprep.subr.bf16.mxu0 0
      %597 = vmatpush1.bf16.msra.mxu0 0
      %598 = vmatprep.subr.bf16.mxu0 0
      %599 = vmatpush1.bf16.msra.mxu0 0
      %600 = vmatprep.subr.bf16.mxu0 0
      %601 = vmatpush1.bf16.msra.mxu0 0
      %602 = vmatprep.mubr.bf16.mxu0 0
      %603 = vmatmul.mubr.bf16.gmra.mrb[0].mxu0 %v562
      %v604 = vpop.f32.mrb[0].mxu0
      %v605 = vadd.f32 0.0, %v604
      %v606 = vpop.f32.mrb[0].mxu0
      %v607 = vpop.f32.mrb[0].mxu0
      %v608 = vadd.f32 0.0, %v607
      %v609 = vpop.f32.mrb[0].mxu0
      %610 = vmatprep.mubr.bf16.mxu0 0
      %611 = vmatmul.mubr.bf16.gmra.mrb[0].mxu0 %v564
      %v612 = vpop.f32.mrb[0].mxu0
      %v613 = vadd.f32 0.0, %v612
      %v614 = vpop.f32.mrb[0].mxu0
      %v615 = vpop.f32.mrb[0].mxu0
      %v616 = vadd.f32 0.0, %v615
      %v617 = vpop.f32.mrb[0].mxu0
      %618 = vmatprep.mubr.bf16.mxu0 0
      %619 = vmatmul.mubr.bf16.gmra.mrb[0].mxu0 %v566
      %v620 = vpop.f32.mrb[0].mxu0
      %v621 = vadd.f32 0.0, %v620
      %v622 = vpop.f32.mrb[0].mxu0
      %v623 = vpop.f32.mrb[0].mxu0
      %v624 = vadd.f32 0.0, %v623
      %v625 = vpop.f32.mrb[0].mxu0
      %626 = vmatprep.mubr.bf16.mxu0 0
      %627 = vmatmul.mubr.bf16.gmra.mrb[0].mxu0 %v568
      %v628 = vpop.f32.mrb[0].mxu0
      %v629 = vadd.f32 0.0, %v628
      %v630 = vpop.f32.mrb[0].mxu0
      %v631 = vpop.f32.mrb[0].mxu0
      %v632 = vadd.f32 0.0, %v631
      %v633 = vpop.f32.mrb[0].mxu0
      %634 = vdwg.mxu0
      %v635 = vpack.c.bf16 %v608, %v605
      %v636 = vpack.c.bf16 %v616, %v613
      %v637 = vpack.c.bf16 %v624, %v621
      %v638 = vpack.c.bf16 %v632, %v629
      %v643 = vunpack.c.l.b16 %v635
      %v644 = vunpack.c.h.b16 %v635
      %v645 = vunpack.c.l.b16 %v636
      %v646 = vunpack.c.h.b16 %v636
      %v647 = vunpack.c.l.b16 %v637
      %v648 = vunpack.c.h.b16 %v637
      %v649 = vunpack.c.l.b16 %v638
      %v650 = vunpack.c.h.b16 %v638
      %v651 = vpack.c.b16 %v643, %v643
      %v652 = vpack.c.b16 %v644, %v644
      %v653 = vpack.c.b16 %v645, %v645
      %v654 = vpack.c.b16 %v646, %v646
      %v655 = vpack.c.b16 %v647, %v647
      %v656 = vpack.c.b16 %v648, %v648
      %v657 = vpack.c.b16 %v649, %v649
      %v658 = vpack.c.b16 %v650, %v650
      %vm667 = vcmask 257024
      %668 = vst.msk [vmem:[%s367] sm:$0xf] %vm667, %v651
      %669 = vst.msk [vmem:[%s367 + $0x4] sm:$0xf] %vm667, %v652
      %670 = vst.msk [vmem:[%s367 + $0x8] sm:$0xf] %vm667, %v653
      %671 = vst.msk [vmem:[%s367 + $0xc] sm:$0xf] %vm667, %v654
      %672 = vst.msk [vmem:[%s367 + $0x10] sm:$0xf] %vm667, %v655
      %673 = vst.msk [vmem:[%s367 + $0x14] sm:$0xf] %vm667, %v656
      %674 = vst.msk [vmem:[%s367 + $0x18] sm:$0xf] %vm667, %v657
      %675 = vst.msk [vmem:[%s367 + $0x1c] sm:$0xf] %vm667, %v658
      %p676 = scmp.eq.s32.totalorder %s24, 0
      // Predicated region
      $region33: #{_upsampler_impl.1} parent=31 // pred_check
        %p677 = pneg %p676
      $region34: #{_upsampler_impl.1} parent=31 // pred_check_branch
        %679 = sbr.rel (%p677) target = $region36
      $region35: #{_upsampler_impl.1} parent=31 // pred_region
        %vm680 = vcmask 253952
        %681 = vst.msk [vmem:[%s377] sm:$0x1] %vm680, 0.0
        %682 = vst.msk [vmem:[%s384] sm:$0x1] %vm680, 0.0
      $region36: #{_upsampler_impl.1} parent=31 // pred_fallthru
        _
      %v683 = vld [vmem:[%s377] sm:$0x1]
      %vm684 = vcmask 261120
      %v685 = vsel %vm684, %v605, 0.0
      %v686 = vsel %vm684, %v608, 0.0
      %v687 = vadd.f32 %v685, %v686
      %v688 = vsel %vm684, %v613, 0.0
      %v689 = vadd.f32 %v687, %v688
      %v690 = vsel %vm684, %v616, 0.0
      %v691 = vadd.f32 %v689, %v690
      %v692 = vsel %vm684, %v621, 0.0
      %v693 = vadd.f32 %v691, %v692
      %v694 = vsel %vm684, %v624, 0.0
      %v695 = vadd.f32 %v693, %v694
      %v696 = vsel %vm684, %v629, 0.0
      %v697 = vadd.f32 %v695, %v696
      %v698 = vsel %vm684, %v632, 0.0
      %v699 = vadd.f32 %v697, %v698
      %v700 = vrot.slane %v699, 4
      %v701 = vadd.f32 %v699, %v700
      %v702 = vrot.slane %v701, 2
      %v703 = vadd.f32 %v701, %v702
      %v704 = vrot.slane %v703, 1
      %v705 = vadd.f32 %v703, %v704
      %v706 = vadd.f32 %v683, %v705
      %vm707 = vcmask 253952
      %708 = vst.msk [vmem:[%s377] sm:$0x1] %vm707, %v706
      %v709 = vld [vmem:[%s384] sm:$0x1]
      %v710 = vmul.f32 %v605, %v605
      %v711 = vmul.f32 %v608, %v608
      %v712 = vmul.f32 %v613, %v613
      %v713 = vmul.f32 %v616, %v616
      %v714 = vmul.f32 %v621, %v621
      %v715 = vmul.f32 %v624, %v624
      %v716 = vmul.f32 %v629, %v629
      %v717 = vmul.f32 %v632, %v632
      %v718 = vsel %vm684, %v710, 0.0
      %v719 = vsel %vm684, %v711, 0.0
      %v720 = vadd.f32 %v718, %v719
      %v721 = vsel %vm684, %v712, 0.0
      %v722 = vadd.f32 %v720, %v721
      %v723 = vsel %vm684, %v713, 0.0
      %v724 = vadd.f32 %v722, %v723
      %v725 = vsel %vm684, %v714, 0.0
      %v726 = vadd.f32 %v724, %v725
      %v727 = vsel %vm684, %v715, 0.0
      %v728 = vadd.f32 %v726, %v727
      %v729 = vsel %vm684, %v716, 0.0
      %v730 = vadd.f32 %v728, %v729
      %v731 = vsel %vm684, %v717, 0.0
      %v732 = vadd.f32 %v730, %v731
      %v733 = vrot.slane %v732, 4
      %v734 = vadd.f32 %v732, %v733
      %v735 = vrot.slane %v734, 2
      %v736 = vadd.f32 %v734, %v735
      %v737 = vrot.slane %v736, 1
      %v738 = vadd.f32 %v736, %v737
      %v739 = vadd.f32 %v709, %v738
      %740 = vst.msk [vmem:[%s384] sm:$0x1] %vm707, %v739
      %s741 = smul.u32 %s23, 2
      %s742 = sadd.s32 %s741, %s24
      %s743 = smul.u32 4, %s742
      %p744 = scmp.lt.s32.totalorder %s22, 1
      %s745 = scalar_select %p744, %s22, 1
      %p746 = scmp.lt.s32.totalorder %s743, 15
      %s747 = scalar_select %p746, %s743, 15
      %s748 = smul.addr %s747, 2
      %s749 = smul.addr %s745, 32
      %s750 = sadd.s32 %s748, %s749
      %s751 = smul.addr %s750, 4
      %s752 = scalar_lea.vmem %s3, %s751
      %p753 = scmp.lt.s32.totalorder %s22, 1
      %s754 = scalar_select %p753, %s22, 1
      %p755 = scmp.lt.s32.totalorder %s23, 1
      %s756 = scalar_select %p755, %s23, 1
      %s757 = smul.addr %s754, 2
      %s758 = sadd.s32 %s756, %s757
      %s759 = scalar_lea.vmem %s4, %s758
      %p760 = scmp.lt.s32.totalorder %s22, 1
      %s761 = scalar_select %p760, %s22, 1
      %p762 = scmp.lt.s32.totalorder %s23, 1
      %s763 = scalar_select %p762, %s23, 1
      %s764 = smul.addr %s761, 2
      %s765 = sadd.s32 %s763, %s764
      %s766 = scalar_lea.vmem %s5, %s765
      // Predicated region
      $region37: #{_upsampler_impl.1} parent=31 // pred_check
        %p767 = pneg %p145
      $region38: #{_upsampler_impl.1} parent=31 // pred_check_branch
        %769 = sbr.rel (%p767) target = $region40
      $region39: #{_upsampler_impl.1} parent=31 // pred_region
        %s770 = smul.u32 %s23, 2
        %s771 = sadd.s32 %s770, %s24
        %s772 = smul.u32 4, %s771
      $region40: #{_upsampler_impl.1} parent=31 // pred_fallthru
        _
      // Predicated region
      $region41: #{_upsampler_impl.1} parent=31 // pred_check
        %p773 = pneg %p173
      $region42: #{_upsampler_impl.1} parent=31 // pred_check_branch
        %775 = sbr.rel (%p773) target = $region44
      $region43: #{_upsampler_impl.1} parent=31 // pred_region
        _
      $region44: #{_upsampler_impl.1} parent=31 // pred_fallthru
        _
      // Predicated region
      $region45: #{_upsampler_impl.1} parent=31 // pred_check
        %p776 = pneg %p201
      $region46: #{_upsampler_impl.1} parent=31 // pred_check_branch
        %778 = sbr.rel (%p776) target = $region48
      $region47: #{_upsampler_impl.1} parent=31 // pred_region
        _
      $region48: #{_upsampler_impl.1} parent=31 // pred_fallthru
        _
    $region32: #{_upsampler_impl.1} parent=5 // pred_fallthru
      _
    %p779 = scmp.le.s32.totalorder 2, %s12
    // Predicated region
    $region49: #{_upsampler_impl.1} parent=5 // pred_check
      %p780 = pneg %p779
    $region50: #{_upsampler_impl.1} parent=5 // pred_check_branch
      %782 = sbr.rel (%p780) target = $region52
    $region51: #{_upsampler_impl.1} parent=5 // pred_region
      %s783 = ssub.s32 %s12, 2
      // Predicated region
      $region53: #{_upsampler_impl.1} parent=51 // pred_check
        %p784 = pneg %p151
      $region54: #{_upsampler_impl.1} parent=51 // pred_check_branch
        %786 = sbr.rel (%p784) target = $region56
      $region55: #{_upsampler_impl.1} parent=51 // pred_region
        %s787 = smul.u32 %s26, 2
        %s788 = sadd.s32 %s787, %s27
        %s789 = smul.u32 4, %s788
        %p790 = scmp.lt.s32.totalorder %s25, 1
        %s791 = scalar_select %p790, %s25, 1
        %p792 = scmp.lt.s32.totalorder %s789, 15
        %s793 = scalar_select %p792, %s789, 15
        %s794 = smul.addr %s793, 2
        %s795 = smul.addr %s791, 32
        %s796 = sadd.s32 %s794, %s795
        %s797 = smul.addr %s796, 4
        %s798 = scalar_lea.vmem %s3, %s797
      $region56: #{_upsampler_impl.1} parent=51 // pred_fallthru
        _
      // Predicated region
      $region57: #{_upsampler_impl.1} parent=51 // pred_check
        %p799 = pneg %p179
      $region58: #{_upsampler_impl.1} parent=51 // pred_check_branch
        %801 = sbr.rel (%p799) target = $region60
      $region59: #{_upsampler_impl.1} parent=51 // pred_region
        %p802 = scmp.lt.s32.totalorder %s25, 1
        %s803 = scalar_select %p802, %s25, 1
        %p804 = scmp.lt.s32.totalorder %s26, 1
        %s805 = scalar_select %p804, %s26, 1
        %s806 = smul.addr %s803, 2
        %s807 = sadd.s32 %s805, %s806
        %s808 = scalar_lea.vmem %s4, %s807
      $region60: #{_upsampler_impl.1} parent=51 // pred_fallthru
        _
      // Predicated region
      $region61: #{_upsampler_impl.1} parent=51 // pred_check
        %p809 = pneg %p207
      $region62: #{_upsampler_impl.1} parent=51 // pred_check_branch
        %811 = sbr.rel (%p809) target = $region64
      $region63: #{_upsampler_impl.1} parent=51 // pred_region
        %p812 = scmp.lt.s32.totalorder %s25, 1
        %s813 = scalar_select %p812, %s25, 1
        %p814 = scmp.lt.s32.totalorder %s26, 1
        %s815 = scalar_select %p814, %s26, 1
        %s816 = smul.addr %s813, 2
        %s817 = sadd.s32 %s815, %s816
        %s818 = scalar_lea.vmem %s5, %s817
      $region64: #{_upsampler_impl.1} parent=51 // pred_fallthru
        _
    $region52: #{_upsampler_impl.1} parent=5 // pred_fallthru
      _
  $region6: #{_upsampler_impl.1} parent=0 // loop_footer
    %s16 = sadd.s32 1, %s12
  $region7: #{_upsampler_impl.1} parent=0 // loop_footer_branch
    %11 = sbr.rel target = $region3
  $region8: #{_upsampler_impl.1} parent=0 // loop_exit
    _

</llo_original>
